<compile_context>
chip_gen: v6e
topology: v6e:2x2x1
jax: 0.10.0
libtpu: 0.0.40
codegen_flags: <defaults>
</compile_context>

<pallas_src>
import functools

import numpy as np
import jax
import jax.numpy as jnp
from jax.experimental import pallas as pl
from jax.experimental.pallas import tpu as pltpu

# 1-D Gaussian taps (sum to 1).  outer(_K1, _K1) == the module's 5x5 kernel / 256.
_K1 = np.array([1.0, 4.0, 6.0, 4.0, 1.0], dtype=np.float64) / 16.0


def _down_matrix(n, nd):
    """(nd, n) banded matrix: zero-padded (pad=2) 5-tap blur followed by ::2 subsample."""
    m = np.zeros((nd, n), dtype=np.float64)
    for i in range(nd):
        for t in range(5):
            r = 2 * i + t - 2
            if 0 <= r < n:
                m[i, r] = _K1[t]
    return m


def _up_matrix(n, nd):
    """(n, nd) banded matrix: zero-insert upsample then 5-tap blur scaled by 2.

    2 (vertical) * 2 (horizontal) = 4 overall, matching GaussianBlur_Up's 4x kernel.
    """
    m = np.zeros((n, nd), dtype=np.float64)
    for y in range(n):
        for i in range(nd):
            t = 2 * i - y + 2
            if 0 <= t < 5:
                m[y, i] = 2.0 * _K1[t]
    return m


def _blockdiag(m, reps):
    r, c = m.shape
    out = np.zeros((reps * r, reps * c), dtype=m.dtype)
    for i in range(reps):
        out[i * r:(i + 1) * r, i * c:(i + 1) * c] = m
    return out


def _choose_group(p, w0, num_levels):
    """Smallest divisor gp of p that keeps the deepest level lane-dense (gp*W_last >= 128)."""
    w_last = w0
    for _ in range(num_levels):
        w_last = (w_last + 1) // 2
    for d in range(1, p + 1):
        if p % d == 0 and d * w_last >= 128:
            return d
    return p  # tiny planes / few planes: fold everything into one lane-dense group


def _make_kernel(num_levels):
    def kernel(g_ref, *refs):
        filt = refs[:4 * num_levels]
        outs = refs[4 * num_levels:]
        g = g_ref[0]                                                  # (H_0, gp*W_0) f32
        for l in range(num_levels):
            dv = filt[4 * l][...]                                     # (H_{l+1}, H_l)
            dht = filt[4 * l + 1][...]                                # (gp*W_l, gp*W_{l+1})
            av = filt[4 * l + 2][...]                                 # (H_l, H_l)
            ah = filt[4 * l + 3][...]                                 # (gp*W_l, gp*W_l)
            down_ref, lap_ref = outs[2 * l], outs[2 * l + 1]

            # Prdown: pad-2 5x5 Gaussian blur + ::2 subsample as two banded matmuls.
            t = jnp.dot(dv, g, preferred_element_type=jnp.float32)    # (H_{l+1}, gp*W_l)
            down = jnp.dot(t, dht, preferred_element_type=jnp.float32)  # (H_{l+1}, gp*W_{l+1})
            down_ref[0] = down

            # Laplacian: g - PrUp(Prdown(g)), with Up∘Down precombined on the host so
            # this chain is independent of `down` above (more MXU ILP).
            u = jnp.dot(av, g, preferred_element_type=jnp.float32)    # (H_l, gp*W_l)
            lap_ref[0] = g - jnp.dot(u, ah, preferred_element_type=jnp.float32)

            g = down
    return kernel


def _pyramid_fused(x, num_levels):
    """x: (B, C, H, W) f32 -> (gaussians list, laplacians list), all levels in one call."""
    b, c, h, w = x.shape
    p = b * c
    gp = _choose_group(p, w, num_levels)
    ng = p // gp

    hs, ws = [h], [w]
    for _ in range(num_levels):
        hs.append((hs[-1] + 1) // 2)
        ws.append((ws[-1] + 1) // 2)

    # Lane-folded layout: planes of one group laid side by side along the lane axis.
    g0 = x.reshape(ng, gp, h, w).transpose(0, 2, 1, 3).reshape(ng, h, gp * w)

    filters = []
    in_specs = [pl.BlockSpec((1, h, gp * w), lambda i: (i, 0, 0))]
    for l in range(num_levels):
        hl, hn, wl, wn = hs[l], hs[l + 1], ws[l], ws[l + 1]
        dv = _down_matrix(hl, hn)            # (hn, hl)
        dh = _down_matrix(wl, wn)            # (wn, wl)
        uv = _up_matrix(hl, hn)              # (hl, hn)
        uh = _up_matrix(wl, wn)              # (wl, wn)
        av = uv @ dv                         # (hl, hl)  Up∘Down vertical (exact, dyadic)
        ah = dh.T @ uh.T                     # (wl, wl)  Up∘Down horizontal (exact, dyadic)
        mats = [dv, _blockdiag(dh.T, gp), av, _blockdiag(ah, gp)]
        filters += [jnp.asarray(m, jnp.float32) for m in mats]
        # Constant block index -> fetched into VMEM once, reused across all grid steps.
        in_specs += [pl.BlockSpec(m.shape, lambda i: (0, 0)) for m in mats]

    out_shapes, out_specs = [], []
    for l in range(num_levels):
        hl, hn, wl, wn = hs[l], hs[l + 1], ws[l], ws[l + 1]
        out_shapes += [jax.ShapeDtypeStruct((ng, hn, gp * wn), jnp.float32),   # down_l
                       jax.ShapeDtypeStruct((ng, hl, gp * wl), jnp.float32)]   # lap_l
        out_specs += [pl.BlockSpec((1, hn, gp * wn), lambda i: (i, 0, 0)),
                      pl.BlockSpec((1, hl, gp * wl), lambda i: (i, 0, 0))]

    # Advisory cost estimate: helps XLA schedule the layout glue around the call.
    flops = 0
    for l in range(num_levels):
        hl, hn, wl, wn = hs[l], hs[l + 1], ws[l], ws[l + 1]
        flops += 2 * ng * (hn * hl * gp * wl + hn * gp * wl * gp * wn          # down chain
                           + hl * hl * gp * wl + hl * gp * wl * gp * wl)       # lap chain
    bytes_accessed = 4 * p * h * w + sum(4 * int(f.size) for f in filters)
    for l in range(num_levels):
        bytes_accessed += 4 * p * (hs[l + 1] * ws[l + 1] + hs[l] * ws[l])

    # Rough double-buffered VMEM need; only raise the scoped limit when required.
    vmem_bytes = 2 * 4 * h * gp * w + sum(2 * 4 * int(f.size) for f in filters)
    for l in range(num_levels):
        vmem_bytes += 2 * 4 * gp * (hs[l + 1] * ws[l + 1] + hs[l] * ws[l])
    vmem_limit = None
    if vmem_bytes > 16 * 1024 * 1024:
        vmem_limit = int(min(2 * vmem_bytes, 64 * 1024 * 1024))

    outs = pl.pallas_call(
        _make_kernel(num_levels),
        out_shape=tuple(out_shapes),
        grid=(ng,),
        in_specs=in_specs,
        out_specs=tuple(out_specs),
        compiler_params=pltpu.CompilerParams(
            dimension_semantics=("parallel",),
            vmem_limit_bytes=vmem_limit,
        ),
        cost_estimate=pl.CostEstimate(flops=int(flops), transcendentals=0,
                                      bytes_accessed=int(bytes_accessed)),
    )(g0, *filters)

    gaussians, laplacians = [x], []
    for l in range(num_levels):
        hl, hn, wl, wn = hs[l], hs[l + 1], ws[l], ws[l + 1]
        down = outs[2 * l].reshape(ng, hn, gp, wn).transpose(0, 2, 1, 3).reshape(b, c, hn, wn)
        lap = outs[2 * l + 1].reshape(ng, hl, gp, wl).transpose(0, 2, 1, 3).reshape(b, c, hl, wl)
        gaussians.append(down)
        laplacians.append(lap)
    return gaussians, laplacians


@functools.partial(jax.jit, static_argnames=("step",))
def laplacian_pyramid(x, step=3):
    """Matches Laplacian_pyramid.forward: returns (Gaussian_lists, Laplacian_lists)."""
    x = x.astype(jnp.float32)
    if step <= 1:
        return [x], []
    return _pyramid_fused(x, step - 1)


# ----------------------------- pure-JAX reference ---------------------------------
def _ref_blur(x, scale):
    k = jnp.asarray(np.outer(_K1, _K1) * scale, jnp.float32)
    h, w = x.shape[2], x.shape[3]
    xp = jnp.pad(x, ((0, 0), (0, 0), (2, 2), (2, 2)))
    out = jnp.zeros_like(x)
    for di in range(5):
        for dj in range(5):
            out = out + k[di, dj] * xp[:, :, di:di + h, dj:dj + w]
    return out


def _ref_pyramid(x, step=3):
    gs = [x.astype(jnp.float32)]
    ls = []
    for _ in range(step - 1):
        blurred = _ref_blur(gs[-1], 1.0)
        down = blurred[:, :, ::2, ::2]
        h, w = gs[-1].shape[2:]
        b, c = down.shape[:2]
        up = jnp.zeros((b, c, h, w), jnp.float32).at[:, :, ::2, ::2].set(down)
        up = _ref_blur(up, 4.0)
        ls.append(gs[-1] - up)
        gs.append(down)
    return gs, ls


if __name__ == "__main__":
    key = jax.random.PRNGKey(0)
    # The module's grouped conv is hard-wired to 3 channels (groups=3).
    x = jax.random.normal(key, (2, 3, 32, 32), dtype=jnp.float32)

    gaussians, laplacians = laplacian_pyramid(x, step=3)
    jax.block_until_ready((gaussians, laplacians))

    # Shape checks: 32 -> 16 -> 8 pyramid, laplacians at 32 and 16.
    assert gaussians[0].shape == (2, 3, 32, 32)
    assert gaussians[1].shape == (2, 3, 16, 16)
    assert gaussians[2].shape == (2, 3, 8, 8)
    assert laplacians[0].shape == (2, 3, 32, 32)
    assert laplacians[1].shape == (2, 3, 16, 16)

    # Numerical check against a plain-JAX transcription of the PyTorch module.
    ref_g, ref_l = _ref_pyramid(x, step=3)
    for got, want in list(zip(gaussians, ref_g)) + list(zip(laplacians, ref_l)):
        np.testing.assert_allclose(np.asarray(got), np.asarray(want),
                                   rtol=1e-2, atol=1e-2)

    print("KERNEL_OK")
</pallas_src>

<mosaic_0001>
module attributes {stable_mosaic.version = 11 : i64} {
  func.func @kernel(%arg0: i32, %arg1: memref<1x32x192xf32, #tpu.memory_space<vmem>>, %arg2: memref<16x32xf32, #tpu.memory_space<vmem>>, %arg3: memref<192x96xf32, #tpu.memory_space<vmem>>, %arg4: memref<32x32xf32, #tpu.memory_space<vmem>>, %arg5: memref<192x192xf32, #tpu.memory_space<vmem>>, %arg6: memref<8x16xf32, #tpu.memory_space<vmem>>, %arg7: memref<96x48xf32, #tpu.memory_space<vmem>>, %arg8: memref<16x16xf32, #tpu.memory_space<vmem>>, %arg9: memref<96x96xf32, #tpu.memory_space<vmem>>, %arg10: memref<1x16x96xf32, #tpu.memory_space<vmem>>, %arg11: memref<1x32x192xf32, #tpu.memory_space<vmem>>, %arg12: memref<1x8x48xf32, #tpu.memory_space<vmem>>, %arg13: memref<1x16x96xf32, #tpu.memory_space<vmem>>) attributes {dimension_semantics = [#tpu.dimension_semantics<parallel>], iteration_bounds = array<i64: 1>, scalar_prefetch = 0 : i64, scratch_operands = 0 : i64, tpu.core_type = #tpu.core_type<tc>, window_params = [{transform_indices = @transform_0, window_bounds = array<i64: 1, 32, 192>}, {pipeline_mode = #tpu.pipeline_mode<synchronous>, transform_indices = @transform_1, window_bounds = array<i64: 16, 32>}, {pipeline_mode = #tpu.pipeline_mode<synchronous>, transform_indices = @transform_2, window_bounds = array<i64: 192, 96>}, {pipeline_mode = #tpu.pipeline_mode<synchronous>, transform_indices = @transform_3, window_bounds = array<i64: 32, 32>}, {pipeline_mode = #tpu.pipeline_mode<synchronous>, transform_indices = @transform_4, window_bounds = array<i64: 192, 192>}, {pipeline_mode = #tpu.pipeline_mode<synchronous>, transform_indices = @transform_5, window_bounds = array<i64: 8, 16>}, {pipeline_mode = #tpu.pipeline_mode<synchronous>, transform_indices = @transform_6, window_bounds = array<i64: 96, 48>}, {pipeline_mode = #tpu.pipeline_mode<synchronous>, transform_indices = @transform_7, window_bounds = array<i64: 16, 16>}, {pipeline_mode = #tpu.pipeline_mode<synchronous>, transform_indices = @transform_8, window_bounds = array<i64: 96, 96>}, {transform_indices = @transform_9, window_bounds = array<i64: 1, 16, 96>}, {transform_indices = @transform_10, window_bounds = array<i64: 1, 32, 192>}, {transform_indices = @transform_11, window_bounds = array<i64: 1, 8, 48>}, {transform_indices = @transform_12, window_bounds = array<i64: 1, 16, 96>}]} {
    %c0 = arith.constant 0 : index
    %c0_0 = arith.constant 0 : index
    %c0_1 = arith.constant 0 : index
    %0 = vector.load %arg1[%c0, %c0_0, %c0_1] : memref<1x32x192xf32, #tpu.memory_space<vmem>>, vector<1x32x192xf32>
    %1 = vector.shape_cast %0 : vector<1x32x192xf32> to vector<32x192xf32>
    %c0_2 = arith.constant 0 : index
    %c0_3 = arith.constant 0 : index
    %2 = vector.load %arg2[%c0_2, %c0_3] : memref<16x32xf32, #tpu.memory_space<vmem>>, vector<16x32xf32>
    %c0_4 = arith.constant 0 : index
    %c0_5 = arith.constant 0 : index
    %3 = vector.load %arg3[%c0_4, %c0_5] : memref<192x96xf32, #tpu.memory_space<vmem>>, vector<192x96xf32>
    %c0_6 = arith.constant 0 : index
    %c0_7 = arith.constant 0 : index
    %4 = vector.load %arg4[%c0_6, %c0_7] : memref<32x32xf32, #tpu.memory_space<vmem>>, vector<32x32xf32>
    %c0_8 = arith.constant 0 : index
    %c0_9 = arith.constant 0 : index
    %5 = vector.load %arg5[%c0_8, %c0_9] : memref<192x192xf32, #tpu.memory_space<vmem>>, vector<192x192xf32>
    %cst = arith.constant dense<0.000000e+00> : vector<16x192xf32>
    %6 = tpu.matmul %2, %1, %cst {dimension_numbers = #tpu.dot_dimension_numbers<[1], [0], [0], [1], [0, 0, 1, 1], [], []>} : vector<16x32xf32>, vector<32x192xf32>, vector<16x192xf32> -> vector<16x192xf32>
    %cst_10 = arith.constant dense<0.000000e+00> : vector<16x96xf32>
    %7 = tpu.matmul %6, %3, %cst_10 {dimension_numbers = #tpu.dot_dimension_numbers<[1], [0], [0], [1], [0, 0, 1, 1], [], []>} : vector<16x192xf32>, vector<192x96xf32>, vector<16x96xf32> -> vector<16x96xf32>
    %c0_11 = arith.constant 0 : index
    %c0_12 = arith.constant 0 : index
    %c0_13 = arith.constant 0 : index
    %8 = vector.load %arg10[%c0_11, %c0_12, %c0_13] : memref<1x16x96xf32, #tpu.memory_space<vmem>>, vector<1x16x96xf32>
    %9 = vector.shape_cast %8 : vector<1x16x96xf32> to vector<16x96xf32>
    %10 = vector.shape_cast %7 : vector<16x96xf32> to vector<1x16x96xf32>
    tpu.vector_store %arg10[%c0_11, %c0_12, %c0_13], %10 {strides = array<i32>} : memref<1x16x96xf32, #tpu.memory_space<vmem>>, vector<1x16x96xf32>,
    %cst_14 = arith.constant dense<0.000000e+00> : vector<32x192xf32>
    %11 = tpu.matmul %4, %1, %cst_14 {dimension_numbers = #tpu.dot_dimension_numbers<[1], [0], [0], [1], [0, 0, 1, 1], [], []>} : vector<32x32xf32>, vector<32x192xf32>, vector<32x192xf32> -> vector<32x192xf32>
    %cst_15 = arith.constant dense<0.000000e+00> : vector<32x192xf32>
    %12 = tpu.matmul %11, %5, %cst_15 {dimension_numbers = #tpu.dot_dimension_numbers<[1], [0], [0], [1], [0, 0, 1, 1], [], []>} : vector<32x192xf32>, vector<192x192xf32>, vector<32x192xf32> -> vector<32x192xf32>
    %13 = arith.subf %1, %12 : vector<32x192xf32>
    %c0_16 = arith.constant 0 : index
    %c0_17 = arith.constant 0 : index
    %c0_18 = arith.constant 0 : index
    %14 = vector.load %arg11[%c0_16, %c0_17, %c0_18] : memref<1x32x192xf32, #tpu.memory_space<vmem>>, vector<1x32x192xf32>
    %15 = vector.shape_cast %14 : vector<1x32x192xf32> to vector<32x192xf32>
    %16 = vector.shape_cast %13 : vector<32x192xf32> to vector<1x32x192xf32>
    tpu.vector_store %arg11[%c0_16, %c0_17, %c0_18], %16 {strides = array<i32>} : memref<1x32x192xf32, #tpu.memory_space<vmem>>, vector<1x32x192xf32>,
    %c0_19 = arith.constant 0 : index
    %c0_20 = arith.constant 0 : index
    %17 = vector.load %arg6[%c0_19, %c0_20] : memref<8x16xf32, #tpu.memory_space<vmem>>, vector<8x16xf32>
    %c0_21 = arith.constant 0 : index
    %c0_22 = arith.constant 0 : index
    %18 = vector.load %arg7[%c0_21, %c0_22] : memref<96x48xf32, #tpu.memory_space<vmem>>, vector<96x48xf32>
    %c0_23 = arith.constant 0 : index
    %c0_24 = arith.constant 0 : index
    %19 = vector.load %arg8[%c0_23, %c0_24] : memref<16x16xf32, #tpu.memory_space<vmem>>, vector<16x16xf32>
    %c0_25 = arith.constant 0 : index
    %c0_26 = arith.constant 0 : index
    %20 = vector.load %arg9[%c0_25, %c0_26] : memref<96x96xf32, #tpu.memory_space<vmem>>, vector<96x96xf32>
    %cst_27 = arith.constant dense<0.000000e+00> : vector<8x96xf32>
    %21 = tpu.matmul %17, %7, %cst_27 {dimension_numbers = #tpu.dot_dimension_numbers<[1], [0], [0], [1], [0, 0, 1, 1], [], []>} : vector<8x16xf32>, vector<16x96xf32>, vector<8x96xf32> -> vector<8x96xf32>
    %cst_28 = arith.constant dense<0.000000e+00> : vector<8x48xf32>
    %22 = tpu.matmul %21, %18, %cst_28 {dimension_numbers = #tpu.dot_dimension_numbers<[1], [0], [0], [1], [0, 0, 1, 1], [], []>} : vector<8x96xf32>, vector<96x48xf32>, vector<8x48xf32> -> vector<8x48xf32>
    %c0_29 = arith.constant 0 : index
    %c0_30 = arith.constant 0 : index
    %c0_31 = arith.constant 0 : index
    %23 = vector.load %arg12[%c0_29, %c0_30, %c0_31] : memref<1x8x48xf32, #tpu.memory_space<vmem>>, vector<1x8x48xf32>
    %24 = vector.shape_cast %23 : vector<1x8x48xf32> to vector<8x48xf32>
    %25 = vector.shape_cast %22 : vector<8x48xf32> to vector<1x8x48xf32>
    tpu.vector_store %arg12[%c0_29, %c0_30, %c0_31], %25 {strides = array<i32>} : memref<1x8x48xf32, #tpu.memory_space<vmem>>, vector<1x8x48xf32>,
    %cst_32 = arith.constant dense<0.000000e+00> : vector<16x96xf32>
    %26 = tpu.matmul %19, %7, %cst_32 {dimension_numbers = #tpu.dot_dimension_numbers<[1], [0], [0], [1], [0, 0, 1, 1], [], []>} : vector<16x16xf32>, vector<16x96xf32>, vector<16x96xf32> -> vector<16x96xf32>
    %cst_33 = arith.constant dense<0.000000e+00> : vector<16x96xf32>
    %27 = tpu.matmul %26, %20, %cst_33 {dimension_numbers = #tpu.dot_dimension_numbers<[1], [0], [0], [1], [0, 0, 1, 1], [], []>} : vector<16x96xf32>, vector<96x96xf32>, vector<16x96xf32> -> vector<16x96xf32>
    %28 = arith.subf %7, %27 : vector<16x96xf32>
    %c0_34 = arith.constant 0 : index
    %c0_35 = arith.constant 0 : index
    %c0_36 = arith.constant 0 : index
    %29 = vector.load %arg13[%c0_34, %c0_35, %c0_36] : memref<1x16x96xf32, #tpu.memory_space<vmem>>, vector<1x16x96xf32>
    %30 = vector.shape_cast %29 : vector<1x16x96xf32> to vector<16x96xf32>
    %31 = vector.shape_cast %28 : vector<16x96xf32> to vector<1x16x96xf32>
    tpu.vector_store %arg13[%c0_34, %c0_35, %c0_36], %31 {strides = array<i32>} : memref<1x16x96xf32, #tpu.memory_space<vmem>>, vector<1x16x96xf32>,
    return
  }
  func.func @transform_0(%arg0: i32) -> (i32, i32, i32) {
    %c0_i32 = arith.constant 0 : i32
    %c0_i32_0 = arith.constant 0 : i32
    %c0_i32_1 = arith.constant 0 : i32
    return %arg0, %c0_i32, %c0_i32_0 : i32, i32, i32
  }
  func.func @transform_1(%arg0: i32) -> (i32, i32) {
    %c0_i32 = arith.constant 0 : i32
    %c0_i32_0 = arith.constant 0 : i32
    %c0_i32_1 = arith.constant 0 : i32
    return %c0_i32, %c0_i32_0 : i32, i32
  }
  func.func @transform_2(%arg0: i32) -> (i32, i32) {
    %c0_i32 = arith.constant 0 : i32
    %c0_i32_0 = arith.constant 0 : i32
    %c0_i32_1 = arith.constant 0 : i32
    return %c0_i32, %c0_i32_0 : i32, i32
  }
  func.func @transform_3(%arg0: i32) -> (i32, i32) {
    %c0_i32 = arith.constant 0 : i32
    %c0_i32_0 = arith.constant 0 : i32
    %c0_i32_1 = arith.constant 0 : i32
    return %c0_i32, %c0_i32_0 : i32, i32
  }
  func.func @transform_4(%arg0: i32) -> (i32, i32) {
    %c0_i32 = arith.constant 0 : i32
    %c0_i32_0 = arith.constant 0 : i32
    %c0_i32_1 = arith.constant 0 : i32
    return %c0_i32, %c0_i32_0 : i32, i32
  }
  func.func @transform_5(%arg0: i32) -> (i32, i32) {
    %c0_i32 = arith.constant 0 : i32
    %c0_i32_0 = arith.constant 0 : i32
    %c0_i32_1 = arith.constant 0 : i32
    return %c0_i32, %c0_i32_0 : i32, i32
  }
  func.func @transform_6(%arg0: i32) -> (i32, i32) {
    %c0_i32 = arith.constant 0 : i32
    %c0_i32_0 = arith.constant 0 : i32
    %c0_i32_1 = arith.constant 0 : i32
    return %c0_i32, %c0_i32_0 : i32, i32
  }
  func.func @transform_7(%arg0: i32) -> (i32, i32) {
    %c0_i32 = arith.constant 0 : i32
    %c0_i32_0 = arith.constant 0 : i32
    %c0_i32_1 = arith.constant 0 : i32
    return %c0_i32, %c0_i32_0 : i32, i32
  }
  func.func @transform_8(%arg0: i32) -> (i32, i32) {
    %c0_i32 = arith.constant 0 : i32
    %c0_i32_0 = arith.constant 0 : i32
    %c0_i32_1 = arith.constant 0 : i32
    return %c0_i32, %c0_i32_0 : i32, i32
  }
  func.func @transform_9(%arg0: i32) -> (i32, i32, i32) {
    %c0_i32 = arith.constant 0 : i32
    %c0_i32_0 = arith.constant 0 : i32
    %c0_i32_1 = arith.constant 0 : i32
    return %arg0, %c0_i32, %c0_i32_0 : i32, i32, i32
  }
  func.func @transform_10(%arg0: i32) -> (i32, i32, i32) {
    %c0_i32 = arith.constant 0 : i32
    %c0_i32_0 = arith.constant 0 : i32
    %c0_i32_1 = arith.constant 0 : i32
    return %arg0, %c0_i32, %c0_i32_0 : i32, i32, i32
  }
  func.func @transform_11(%arg0: i32) -> (i32, i32, i32) {
    %c0_i32 = arith.constant 0 : i32
    %c0_i32_0 = arith.constant 0 : i32
    %c0_i32_1 = arith.constant 0 : i32
    return %arg0, %c0_i32, %c0_i32_0 : i32, i32, i32
  }
  func.func @transform_12(%arg0: i32) -> (i32, i32, i32) {
    %c0_i32 = arith.constant 0 : i32
    %c0_i32_0 = arith.constant 0 : i32
    %c0_i32_1 = arith.constant 0 : i32
    return %arg0, %c0_i32, %c0_i32_0 : i32, i32, i32
  }
}

</mosaic_0001>

<llo_original>
// kernel: laplacian_pyramid.1
$region0: #{laplacian_pyramid.1}
  #allocation0 [shape = 'u32[]', space=smem, size = 0x4, offset = 0x4, fixed_abs, tag = 'smem constant byte address 0x4 - core index']
  #allocation1 [shape = 'u32[144,128]{1,0:T(1,128)}', space=vmem, size = 0x12000, scoped, tag = 'internal scratch']
  %s0 = inlined_call_operand.vmem [shape: f32[1,32,192], index: 0, kind: input, shape index: {}]
  %s1 = inlined_call_operand.hbm [shape: f32[16,32], index: 1, kind: input, shape index: {}]
  %s2 = inlined_call_operand.vmem [shape: f32[192,96], index: 2, kind: input, shape index: {}]
  %s3 = inlined_call_operand.hbm [shape: f32[32,32], index: 3, kind: input, shape index: {}]
  %s4 = inlined_call_operand.vmem [shape: f32[192,192], index: 4, kind: input, shape index: {}]
  %s5 = inlined_call_operand.vmem [shape: f32[8,16], index: 5, kind: input, shape index: {}]
  %s6 = inlined_call_operand.vmem [shape: f32[96,48], index: 6, kind: input, shape index: {}]
  %s7 = inlined_call_operand.hbm [shape: f32[16,16], index: 7, kind: input, shape index: {}]
  %s8 = inlined_call_operand.vmem [shape: f32[96,96], index: 8, kind: input, shape index: {}]
  %s9 = inlined_call_operand.vmem [shape: f32[1,16,96], index: 9, kind: output, shape index: {0}]
  %s10 = inlined_call_operand.vmem [shape: f32[1,32,192], index: 10, kind: output, shape index: {1}]
  %s11 = inlined_call_operand.vmem [shape: f32[1,8,48], index: 11, kind: output, shape index: {2}]
  %s12 = inlined_call_operand.vmem [shape: f32[1,16,96], index: 12, kind: output, shape index: {3}]
  %13 = xla_tuple %s9, %s10, %s11, %s12
  %s14 = sld [smem:[#allocation0]]
  $region82: #{laplacian_pyramid.1} parent=0
    _
  %s16 = ssub.s32 1, %s14
  %s17 = scalar_select 0, %s16, %s14
  $region1: #{laplacian_pyramid.1} parent=0
    #allocation2 [shape = 'u8[8192]{0}', space=vmem, size = 0x2000, scoped, tag = 'input window, operand 1, single buffered']
    #allocation3 [shape = 's32[1]{0}', space=sflag, size = 0x4, scoped, tag = 'scoped memory for laplacian_pyramid.1']
    #allocation4 [shape = 'u8[16384]{0}', space=vmem, size = 0x4000, scoped, tag = 'input window, operand 3, single buffered']
    #allocation5 [shape = 's32[1]{0}', space=sflag, size = 0x4, scoped, tag = 'scoped memory for laplacian_pyramid.1']
    #allocation6 [shape = 'u8[8192]{0}', space=vmem, size = 0x2000, scoped, tag = 'input window, operand 7, single buffered']
    %18 = vsyncpa [#allocation3], 0
    %19 = vsyncpa [#allocation5], 0
    // Predicated region
    $region2: #{laplacian_pyramid.1} parent=1 // pred_check
      _
    $region3: #{laplacian_pyramid.1} parent=1 // pred_check_branch
      %21 = sbr.rel (0) target = $region5
    $region4: #{laplacian_pyramid.1} parent=1 // pred_region
      _
    $region5: #{laplacian_pyramid.1} parent=1 // pred_fallthru
      _
    // Predicated region
    $region6: #{laplacian_pyramid.1} parent=1 // pred_check
      _
    $region7: #{laplacian_pyramid.1} parent=1 // pred_check_branch
      %23 = sbr.rel (0) target = $region9
    $region8: #{laplacian_pyramid.1} parent=1 // pred_region
      %s25 = ssub.s32 256, 256
      %26 = vsyncadd [#allocation3], %s25
      %s27 = sshll.u32 [#allocation2], 4
      %s28 = int_to_ptr.vmem [resolvable:$true] %s27
      %33 = dma.hbm_to_vmem [thread:$0]  %s1, 256, %s28, [#allocation3], 128, 128, 8
    $region9: #{laplacian_pyramid.1} parent=1 // pred_fallthru
      _
    // Predicated region
    $region10: #{laplacian_pyramid.1} parent=1 // pred_check
      _
    $region11: #{laplacian_pyramid.1} parent=1 // pred_check_branch
      %35 = sbr.rel (0) target = $region13
    $region12: #{laplacian_pyramid.1} parent=1 // pred_region
      _
    $region13: #{laplacian_pyramid.1} parent=1 // pred_fallthru
      _
    // Predicated region
    $region14: #{laplacian_pyramid.1} parent=1 // pred_check
      _
    $region15: #{laplacian_pyramid.1} parent=1 // pred_check_branch
      %37 = sbr.rel (0) target = $region17
    $region16: #{laplacian_pyramid.1} parent=1 // pred_region
      %s39 = ssub.s32 512, 512
      %40 = vsyncadd [#allocation5], %s39
      %s41 = sshll.u32 [#allocation4], 4
      %s42 = int_to_ptr.vmem [resolvable:$true] %s41
      %47 = dma.hbm_to_vmem [thread:$0]  %s3, 512, %s42, [#allocation5], 128, 128, 8
    $region17: #{laplacian_pyramid.1} parent=1 // pred_fallthru
      _
    // Predicated region
    $region18: #{laplacian_pyramid.1} parent=1 // pred_check
      _
    $region19: #{laplacian_pyramid.1} parent=1 // pred_check_branch
      %49 = sbr.rel (0) target = $region21
    $region20: #{laplacian_pyramid.1} parent=1 // pred_region
      _
    $region21: #{laplacian_pyramid.1} parent=1 // pred_fallthru
      _
    // Predicated region
    $region22: #{laplacian_pyramid.1} parent=1 // pred_check
      _
    $region23: #{laplacian_pyramid.1} parent=1 // pred_check_branch
      %51 = sbr.rel (0) target = $region25
    $region24: #{laplacian_pyramid.1} parent=1 // pred_region
      _
    $region25: #{laplacian_pyramid.1} parent=1 // pred_fallthru
      _
    // Predicated region
    $region26: #{laplacian_pyramid.1} parent=1 // pred_check
      _
    $region27: #{laplacian_pyramid.1} parent=1 // pred_check_branch
      %53 = sbr.rel (0) target = $region29
    $region28: #{laplacian_pyramid.1} parent=1 // pred_region
      _
    $region29: #{laplacian_pyramid.1} parent=1 // pred_fallthru
      _
    // Predicated region
    $region30: #{laplacian_pyramid.1} parent=1 // pred_check
      _
    $region31: #{laplacian_pyramid.1} parent=1 // pred_check_branch
      %55 = sbr.rel (0) target = $region33
    $region32: #{laplacian_pyramid.1} parent=1 // pred_region
      %s57 = ssub.s32 256, 256
      %58 = vsyncadd [#allocation5], %s57
      %s59 = sshll.u32 [#allocation6], 4
      %s60 = int_to_ptr.vmem [resolvable:$true] %s59
      %65 = dma.hbm_to_vmem [thread:$0]  %s7, 256, %s60, [#allocation5], 128, 128, 8
    $region33: #{laplacian_pyramid.1} parent=1 // pred_fallthru
      _
    // Predicated region
    $region34: #{laplacian_pyramid.1} parent=1 // pred_check
      _
    $region35: #{laplacian_pyramid.1} parent=1 // pred_check_branch
      %67 = sbr.rel (0) target = $region37
    $region36: #{laplacian_pyramid.1} parent=1 // pred_region
      _
    $region37: #{laplacian_pyramid.1} parent=1 // pred_fallthru
      _
    // Predicated region
    $region38: #{laplacian_pyramid.1} parent=1 // pred_check
      _
    $region39: #{laplacian_pyramid.1} parent=1 // pred_check_branch
      %69 = sbr.rel (0) target = $region41
    $region40: #{laplacian_pyramid.1} parent=1 // pred_region
      %70 = dma.done [#allocation3], 256
    $region41: #{laplacian_pyramid.1} parent=1 // pred_fallthru
      _
    // Predicated region
    $region42: #{laplacian_pyramid.1} parent=1 // pred_check
      _
    $region43: #{laplacian_pyramid.1} parent=1 // pred_check_branch
      %72 = sbr.rel (0) target = $region45
    $region44: #{laplacian_pyramid.1} parent=1 // pred_region
      %73 = dma.done [#allocation5], 512
    $region45: #{laplacian_pyramid.1} parent=1 // pred_fallthru
      _
    // Predicated region
    $region46: #{laplacian_pyramid.1} parent=1 // pred_check
      _
    $region47: #{laplacian_pyramid.1} parent=1 // pred_check_branch
      %75 = sbr.rel (0) target = $region49
    $region48: #{laplacian_pyramid.1} parent=1 // pred_region
      %76 = dma.done [#allocation5], 256
    $region49: #{laplacian_pyramid.1} parent=1 // pred_fallthru
      _
    %v77 = vld [vmem:[%s0] sm:$0xff]
    %v78 = vld [vmem:[%s0 + $0x8] sm:$0xff]
    %v79 = vld [vmem:[%s0 + $0x10] sm:$0xff]
    %v80 = vld [vmem:[%s0 + $0x18] sm:$0xff]
    %v81 = vld [vmem:[%s0 + $0x20] sm:$0xff]
    %v82 = vld [vmem:[%s0 + $0x28] sm:$0xff]
    %v83 = vld [vmem:[%s0 + $0x30] sm:$0xff]
    %v84 = vld [vmem:[%s0 + $0x38] sm:$0xff]
    %v85 = vld [vmem:[#allocation2] sm:$0xff]
    %v86 = vld [vmem:[#allocation2 + $0x8] sm:$0xff]
    %v87 = vld [vmem:[%s2] sm:$0xff]
    %v88 = vld [vmem:[%s2 + $0x8] sm:$0xff]
    %v89 = vld [vmem:[%s2 + $0x10] sm:$0xff]
    %v90 = vld [vmem:[%s2 + $0x18] sm:$0xff]
    %v91 = vld [vmem:[%s2 + $0x20] sm:$0xff]
    %v92 = vld [vmem:[%s2 + $0x28] sm:$0xff]
    %v93 = vld [vmem:[%s2 + $0x30] sm:$0xff]
    %v94 = vld [vmem:[%s2 + $0x38] sm:$0xff]
    %v95 = vld [vmem:[%s2 + $0x40] sm:$0xff]
    %v96 = vld [vmem:[%s2 + $0x48] sm:$0xff]
    %v97 = vld [vmem:[%s2 + $0x50] sm:$0xff]
    %v98 = vld [vmem:[%s2 + $0x58] sm:$0xff]
    %v99 = vld [vmem:[%s2 + $0x60] sm:$0xff]
    %v100 = vld [vmem:[%s2 + $0x68] sm:$0xff]
    %v101 = vld [vmem:[%s2 + $0x70] sm:$0xff]
    %v102 = vld [vmem:[%s2 + $0x78] sm:$0xff]
    %v103 = vld [vmem:[%s2 + $0x80] sm:$0xff]
    %v104 = vld [vmem:[%s2 + $0x88] sm:$0xff]
    %v105 = vld [vmem:[%s2 + $0x90] sm:$0xff]
    %v106 = vld [vmem:[%s2 + $0x98] sm:$0xff]
    %v107 = vld [vmem:[%s2 + $0xa0] sm:$0xff]
    %v108 = vld [vmem:[%s2 + $0xa8] sm:$0xff]
    %v109 = vld [vmem:[%s2 + $0xb0] sm:$0xff]
    %v110 = vld [vmem:[%s2 + $0xb8] sm:$0xff]
    %v111 = vld [vmem:[#allocation4] sm:$0xff]
    %v112 = vld [vmem:[#allocation4 + $0x8] sm:$0xff]
    %v113 = vld [vmem:[#allocation4 + $0x10] sm:$0xff]
    %v114 = vld [vmem:[#allocation4 + $0x18] sm:$0xff]
    %v115 = vld [vmem:[%s4] sm:$0xff]
    %v116 = vld [vmem:[%s4 + $0x8] sm:$0xff]
    %v117 = vld [vmem:[%s4 + $0x10] sm:$0xff]
    %v118 = vld [vmem:[%s4 + $0x18] sm:$0xff]
    %v119 = vld [vmem:[%s4 + $0x20] sm:$0xff]
    %v120 = vld [vmem:[%s4 + $0x28] sm:$0xff]
    %v121 = vld [vmem:[%s4 + $0x30] sm:$0xff]
    %v122 = vld [vmem:[%s4 + $0x38] sm:$0xff]
    %v123 = vld [vmem:[%s4 + $0x40] sm:$0xff]
    %v124 = vld [vmem:[%s4 + $0x48] sm:$0xff]
    %v125 = vld [vmem:[%s4 + $0x50] sm:$0xff]
    %v126 = vld [vmem:[%s4 + $0x58] sm:$0xff]
    %v127 = vld [vmem:[%s4 + $0x60] sm:$0xff]
    %v128 = vld [vmem:[%s4 + $0x68] sm:$0xff]
    %v129 = vld [vmem:[%s4 + $0x70] sm:$0xff]
    %v130 = vld [vmem:[%s4 + $0x78] sm:$0xff]
    %v131 = vld [vmem:[%s4 + $0x80] sm:$0xff]
    %v132 = vld [vmem:[%s4 + $0x88] sm:$0xff]
    %v133 = vld [vmem:[%s4 + $0x90] sm:$0xff]
    %v134 = vld [vmem:[%s4 + $0x98] sm:$0xff]
    %v135 = vld [vmem:[%s4 + $0xa0] sm:$0xff]
    %v136 = vld [vmem:[%s4 + $0xa8] sm:$0xff]
    %v137 = vld [vmem:[%s4 + $0xb0] sm:$0xff]
    %v138 = vld [vmem:[%s4 + $0xb8] sm:$0xff]
    %v139 = vld [vmem:[%s4 + $0xc0] sm:$0xff]
    %v140 = vld [vmem:[%s4 + $0xc8] sm:$0xff]
    %v141 = vld [vmem:[%s4 + $0xd0] sm:$0xff]
    %v142 = vld [vmem:[%s4 + $0xd8] sm:$0xff]
    %v143 = vld [vmem:[%s4 + $0xe0] sm:$0xff]
    %v144 = vld [vmem:[%s4 + $0xe8] sm:$0xff]
    %v145 = vld [vmem:[%s4 + $0xf0] sm:$0xff]
    %v146 = vld [vmem:[%s4 + $0xf8] sm:$0xff]
    %v147 = vld [vmem:[%s4 + $0x100] sm:$0xff]
    %v148 = vld [vmem:[%s4 + $0x108] sm:$0xff]
    %v149 = vld [vmem:[%s4 + $0x110] sm:$0xff]
    %v150 = vld [vmem:[%s4 + $0x118] sm:$0xff]
    %v151 = vld [vmem:[%s4 + $0x120] sm:$0xff]
    %v152 = vld [vmem:[%s4 + $0x128] sm:$0xff]
    %v153 = vld [vmem:[%s4 + $0x130] sm:$0xff]
    %v154 = vld [vmem:[%s4 + $0x138] sm:$0xff]
    %v155 = vld [vmem:[%s4 + $0x140] sm:$0xff]
    %v156 = vld [vmem:[%s4 + $0x148] sm:$0xff]
    %v157 = vld [vmem:[%s4 + $0x150] sm:$0xff]
    %v158 = vld [vmem:[%s4 + $0x158] sm:$0xff]
    %v159 = vld [vmem:[%s4 + $0x160] sm:$0xff]
    %v160 = vld [vmem:[%s4 + $0x168] sm:$0xff]
    %v161 = vld [vmem:[%s4 + $0x170] sm:$0xff]
    %v162 = vld [vmem:[%s4 + $0x178] sm:$0xff]
    %vm163 = vcmask 261120
    %v165 = vsel %vm163, %v85, 0
    %v168 = vsel %vm163, %v86, 0
    %170 = vmatprep.subr.mxu0 0.0
    %171 = vmatpush1.msra.mxu0 0.0
    %172 = vmatprep.subr.mxu0 0.0
    %173 = vmatpush1.msra.mxu0 0.0
    %174 = vmatprep.subr.mxu0 0.0
    %175 = vmatpush1.msra.mxu0 0.0
    %176 = vmatprep.subr.mxu0 0.0
    %177 = vmatpush1.msra.mxu0 0.0
    %178 = vmatprep.subr.mxu0 0.0
    %179 = vmatpush1.msra.mxu0 0.0
    %180 = vmatprep.subr.mxu0 0.0
    %181 = vmatpush1.msra.mxu0 0.0
    %182 = vmatprep.subr.mxu0 0.0
    %183 = vmatpush1.msra.mxu0 0.0
    %184 = vmatprep.subr.mxu0 0.0
    %185 = vmatpush1.msra.mxu0 0.0
    %186 = vmatprep.subr.mxu0 0.0
    %187 = vmatpush1.msra.mxu0 0.0
    %188 = vmatprep.subr.mxu0 0.0
    %189 = vmatpush1.msra.mxu0 0.0
    %190 = vmatprep.subr.mxu0 0.0
    %191 = vmatpush1.msra.mxu0 0.0
    %192 = vmatprep.subr.mxu0 0.0
    %193 = vmatpush1.msra.mxu0 0.0
    %194 = vmatprep.subr.mxu0 %v84
    %195 = vmatpush1.msra.mxu0 %v83
    %196 = vmatprep.subr.mxu0 %v82
    %197 = vmatpush1.msra.mxu0 %v81
    %198 = vmatprep.subr.mxu0 %v80
    %199 = vmatpush1.msra.mxu0 %v79
    %200 = vmatprep.subr.mxu0 %v78
    %201 = vmatpush1.msra.mxu0 %v77
    %202 = vmatprep.subr.mxu0 0.0
    %203 = vmatpush2.msra.mxu0 0.0
    %204 = vmatprep.subr.mxu0 0.0
    %205 = vmatpush2.msra.mxu0 0.0
    %206 = vmatprep.subr.mxu0 0.0
    %207 = vmatpush2.msra.mxu0 0.0
    %208 = vmatprep.subr.mxu0 0.0
    %209 = vmatpush2.msra.mxu0 0.0
    %210 = vmatprep.subr.mxu0 0.0
    %211 = vmatpush2.msra.mxu0 0.0
    %212 = vmatprep.subr.mxu0 0.0
    %213 = vmatpush2.msra.mxu0 0.0
    %214 = vmatprep.subr.mxu0 0.0
    %215 = vmatpush2.msra.mxu0 0.0
    %216 = vmatprep.subr.mxu0 0.0
    %217 = vmatpush2.msra.mxu0 0.0
    %218 = vmatprep.subr.mxu0 0.0
    %219 = vmatpush2.msra.mxu0 0.0
    %220 = vmatprep.subr.mxu0 0.0
    %221 = vmatpush2.msra.mxu0 0.0
    %222 = vmatprep.subr.mxu0 0.0
    %223 = vmatpush2.msra.mxu0 0.0
    %224 = vmatprep.subr.mxu0 0.0
    %225 = vmatpush2.msra.mxu0 0.0
    %226 = vmatprep.subr.mxu0 0.0
    %227 = vmatpush2.msra.mxu0 0.0
    %228 = vmatprep.subr.mxu0 0.0
    %229 = vmatpush2.msra.mxu0 0.0
    %230 = vmatprep.subr.mxu0 0.0
    %231 = vmatpush2.msra.mxu0 0.0
    %232 = vmatprep.subr.mxu0 0.0
    %233 = vmatpush2.msra.mxu0 0.0
    %234 = vmatprep.mubr.f32.mxu0 0.0
    %235 = vmatmul.mubr.f32.gmra.mxu0 %v165
    %v236 = vpop.f32.mrf.mxu0
    %v237 = vadd.f32 0.0, %v236
    %v238 = vpop.f32.mrf.mxu0
    %v239 = vadd.f32 0.0, %v238
    %240 = vmatprep.mubr.f32.mxu0 0.0
    %241 = vmatmul.mubr.f32.gmra.mxu0 %v168
    %v242 = vpop.f32.mrf.mxu0
    %v243 = vadd.f32 0.0, %v242
    %v244 = vpop.f32.mrf.mxu0
    %v245 = vadd.f32 0.0, %v244
    %246 = vdwg.mxu0
    %vm247 = vcmask 523264
    %v249 = vsel %vm247, %v239, 0
    %v252 = vsel %vm247, %v245, 0
    %254 = vmatprep.subr.mxu0 0.0
    %255 = vmatpush1.msra.mxu0 %v102
    %256 = vmatprep.subr.mxu0 0.0
    %257 = vmatpush1.msra.mxu0 %v101
    %258 = vmatprep.subr.mxu0 0.0
    %259 = vmatpush1.msra.mxu0 %v100
    %260 = vmatprep.subr.mxu0 0.0
    %261 = vmatpush1.msra.mxu0 %v99
    %262 = vmatprep.subr.mxu0 0.0
    %263 = vmatpush1.msra.mxu0 %v98
    %264 = vmatprep.subr.mxu0 0.0
    %265 = vmatpush1.msra.mxu0 %v97
    %266 = vmatprep.subr.mxu0 0.0
    %267 = vmatpush1.msra.mxu0 %v96
    %268 = vmatprep.subr.mxu0 0.0
    %269 = vmatpush1.msra.mxu0 %v95
    %270 = vmatprep.subr.mxu0 0.0
    %271 = vmatpush1.msra.mxu0 %v94
    %272 = vmatprep.subr.mxu0 0.0
    %273 = vmatpush1.msra.mxu0 %v93
    %274 = vmatprep.subr.mxu0 0.0
    %275 = vmatpush1.msra.mxu0 %v92
    %276 = vmatprep.subr.mxu0 0.0
    %277 = vmatpush1.msra.mxu0 %v91
    %278 = vmatprep.subr.mxu0 0.0
    %279 = vmatpush1.msra.mxu0 %v90
    %280 = vmatprep.subr.mxu0 0.0
    %281 = vmatpush1.msra.mxu0 %v89
    %282 = vmatprep.subr.mxu0 0.0
    %283 = vmatpush1.msra.mxu0 %v88
    %284 = vmatprep.subr.mxu0 0.0
    %285 = vmatpush1.msra.mxu0 %v87
    %286 = vmatprep.subr.mxu0 0.0
    %287 = vmatpush2.msra.mxu0 0.0
    %288 = vmatprep.subr.mxu0 0.0
    %289 = vmatpush2.msra.mxu0 0.0
    %290 = vmatprep.subr.mxu0 0.0
    %291 = vmatpush2.msra.mxu0 0.0
    %292 = vmatprep.subr.mxu0 0.0
    %293 = vmatpush2.msra.mxu0 0.0
    %294 = vmatprep.subr.mxu0 0.0
    %295 = vmatpush2.msra.mxu0 0.0
    %296 = vmatprep.subr.mxu0 0.0
    %297 = vmatpush2.msra.mxu0 0.0
    %298 = vmatprep.subr.mxu0 0.0
    %299 = vmatpush2.msra.mxu0 0.0
    %300 = vmatprep.subr.mxu0 0.0
    %301 = vmatpush2.msra.mxu0 0.0
    %302 = vmatprep.subr.mxu0 0.0
    %303 = vmatpush2.msra.mxu0 %v110
    %304 = vmatprep.subr.mxu0 0.0
    %305 = vmatpush2.msra.mxu0 %v109
    %306 = vmatprep.subr.mxu0 0.0
    %307 = vmatpush2.msra.mxu0 %v108
    %308 = vmatprep.subr.mxu0 0.0
    %309 = vmatpush2.msra.mxu0 %v107
    %310 = vmatprep.subr.mxu0 0.0
    %311 = vmatpush2.msra.mxu0 %v106
    %312 = vmatprep.subr.mxu0 0.0
    %313 = vmatpush2.msra.mxu0 %v105
    %314 = vmatprep.subr.mxu0 0.0
    %315 = vmatpush2.msra.mxu0 %v104
    %316 = vmatprep.subr.mxu0 0.0
    %317 = vmatpush2.msra.mxu0 %v103
    %318 = vmatprep.mubr.f32.mxu0 %v249
    %319 = vmatmul.mubr.f32.gmra.mxu0 %v237
    %v320 = vpop.f32.mrf.mxu0
    %v321 = vadd.f32 0.0, %v320
    %v322 = vpop.f32.mrf.mxu0
    %323 = vmatprep.mubr.f32.mxu0 %v252
    %324 = vmatmul.mubr.f32.gmra.mxu0 %v243
    %v325 = vpop.f32.mrf.mxu0
    %v326 = vadd.f32 0.0, %v325
    %v327 = vpop.f32.mrf.mxu0
    %328 = vdwg.mxu0
    %vm329 = vcmask 785408
    %330 = vst.msk [vmem:[%s9] sm:$0xff] %vm329, %v321
    %331 = vst.msk [vmem:[%s9 + $0x8] sm:$0xff] %vm329, %v326
    %v333 = vsel %vm163, %v111, 0
    %v336 = vsel %vm163, %v112, 0
    %v339 = vsel %vm163, %v113, 0
    %v342 = vsel %vm163, %v114, 0
    %344 = vmatprep.subr.mxu0 0.0
    %345 = vmatpush1.msra.mxu0 0.0
    %346 = vmatprep.subr.mxu0 0.0
    %347 = vmatpush1.msra.mxu0 0.0
    %348 = vmatprep.subr.mxu0 0.0
    %349 = vmatpush1.msra.mxu0 0.0
    %350 = vmatprep.subr.mxu0 0.0
    %351 = vmatpush1.msra.mxu0 0.0
    %352 = vmatprep.subr.mxu0 0.0
    %353 = vmatpush1.msra.mxu0 0.0
    %354 = vmatprep.subr.mxu0 0.0
    %355 = vmatpush1.msra.mxu0 0.0
    %356 = vmatprep.subr.mxu0 0.0
    %357 = vmatpush1.msra.mxu0 0.0
    %358 = vmatprep.subr.mxu0 0.0
    %359 = vmatpush1.msra.mxu0 0.0
    %360 = vmatprep.subr.mxu0 0.0
    %361 = vmatpush1.msra.mxu0 0.0
    %362 = vmatprep.subr.mxu0 0.0
    %363 = vmatpush1.msra.mxu0 0.0
    %364 = vmatprep.subr.mxu0 0.0
    %365 = vmatpush1.msra.mxu0 0.0
    %366 = vmatprep.subr.mxu0 0.0
    %367 = vmatpush1.msra.mxu0 0.0
    %368 = vmatprep.subr.mxu0 %v84
    %369 = vmatpush1.msra.mxu0 %v83
    %370 = vmatprep.subr.mxu0 %v82
    %371 = vmatpush1.msra.mxu0 %v81
    %372 = vmatprep.subr.mxu0 %v80
    %373 = vmatpush1.msra.mxu0 %v79
    %374 = vmatprep.subr.mxu0 %v78
    %375 = vmatpush1.msra.mxu0 %v77
    %376 = vmatprep.subr.mxu0 0.0
    %377 = vmatpush2.msra.mxu0 0.0
    %378 = vmatprep.subr.mxu0 0.0
    %379 = vmatpush2.msra.mxu0 0.0
    %380 = vmatprep.subr.mxu0 0.0
    %381 = vmatpush2.msra.mxu0 0.0
    %382 = vmatprep.subr.mxu0 0.0
    %383 = vmatpush2.msra.mxu0 0.0
    %384 = vmatprep.subr.mxu0 0.0
    %385 = vmatpush2.msra.mxu0 0.0
    %386 = vmatprep.subr.mxu0 0.0
    %387 = vmatpush2.msra.mxu0 0.0
    %388 = vmatprep.subr.mxu0 0.0
    %389 = vmatpush2.msra.mxu0 0.0
    %390 = vmatprep.subr.mxu0 0.0
    %391 = vmatpush2.msra.mxu0 0.0
    %392 = vmatprep.subr.mxu0 0.0
    %393 = vmatpush2.msra.mxu0 0.0
    %394 = vmatprep.subr.mxu0 0.0
    %395 = vmatpush2.msra.mxu0 0.0
    %396 = vmatprep.subr.mxu0 0.0
    %397 = vmatpush2.msra.mxu0 0.0
    %398 = vmatprep.subr.mxu0 0.0
    %399 = vmatpush2.msra.mxu0 0.0
    %400 = vmatprep.subr.mxu0 0.0
    %401 = vmatpush2.msra.mxu0 0.0
    %402 = vmatprep.subr.mxu0 0.0
    %403 = vmatpush2.msra.mxu0 0.0
    %404 = vmatprep.subr.mxu0 0.0
    %405 = vmatpush2.msra.mxu0 0.0
    %406 = vmatprep.subr.mxu0 0.0
    %407 = vmatpush2.msra.mxu0 0.0
    %408 = vmatprep.mubr.f32.mxu0 0.0
    %409 = vmatmul.mubr.f32.gmra.mxu0 %v333
    %v410 = vpop.f32.mrf.mxu0
    %v411 = vadd.f32 0.0, %v410
    %v412 = vpop.f32.mrf.mxu0
    %v413 = vadd.f32 0.0, %v412
    %414 = vmatprep.mubr.f32.mxu0 0.0
    %415 = vmatmul.mubr.f32.gmra.mxu0 %v336
    %v416 = vpop.f32.mrf.mxu0
    %v417 = vadd.f32 0.0, %v416
    %v418 = vpop.f32.mrf.mxu0
    %v419 = vadd.f32 0.0, %v418
    %420 = vmatprep.mubr.f32.mxu0 0.0
    %421 = vmatmul.mubr.f32.gmra.mxu0 %v339
    %v422 = vpop.f32.mrf.mxu0
    %v423 = vadd.f32 0.0, %v422
    %v424 = vpop.f32.mrf.mxu0
    %v425 = vadd.f32 0.0, %v424
    %426 = vmatprep.mubr.f32.mxu0 0.0
    %427 = vmatmul.mubr.f32.gmra.mxu0 %v342
    %v428 = vpop.f32.mrf.mxu0
    %v429 = vadd.f32 0.0, %v428
    %v430 = vpop.f32.mrf.mxu0
    %v431 = vadd.f32 0.0, %v430
    %432 = vdwg.mxu0
    %v434 = vsel %vm247, %v413, 0
    %v437 = vsel %vm247, %v419, 0
    %v440 = vsel %vm247, %v425, 0
    %v443 = vsel %vm247, %v431, 0
    %445 = vmatprep.subr.mxu0 %v146
    %446 = vmatpush1.msra.mxu0 %v145
    %447 = vmatprep.subr.mxu0 %v144
    %448 = vmatpush1.msra.mxu0 %v143
    %449 = vmatprep.subr.mxu0 %v142
    %450 = vmatpush1.msra.mxu0 %v141
    %451 = vmatprep.subr.mxu0 %v140
    %452 = vmatpush1.msra.mxu0 %v139
    %453 = vmatprep.subr.mxu0 %v138
    %454 = vmatpush1.msra.mxu0 %v137
    %455 = vmatprep.subr.mxu0 %v136
    %456 = vmatpush1.msra.mxu0 %v135
    %457 = vmatprep.subr.mxu0 %v134
    %458 = vmatpush1.msra.mxu0 %v133
    %459 = vmatprep.subr.mxu0 %v132
    %460 = vmatpush1.msra.mxu0 %v131
    %461 = vmatprep.subr.mxu0 %v130
    %462 = vmatpush1.msra.mxu0 %v129
    %463 = vmatprep.subr.mxu0 %v128
    %464 = vmatpush1.msra.mxu0 %v127
    %465 = vmatprep.subr.mxu0 %v126
    %466 = vmatpush1.msra.mxu0 %v125
    %467 = vmatprep.subr.mxu0 %v124
    %468 = vmatpush1.msra.mxu0 %v123
    %469 = vmatprep.subr.mxu0 %v122
    %470 = vmatpush1.msra.mxu0 %v121
    %471 = vmatprep.subr.mxu0 %v120
    %472 = vmatpush1.msra.mxu0 %v119
    %473 = vmatprep.subr.mxu0 %v118
    %474 = vmatpush1.msra.mxu0 %v117
    %475 = vmatprep.subr.mxu0 %v116
    %476 = vmatpush1.msra.mxu0 %v115
    %477 = vmatprep.subr.mxu0 0.0
    %478 = vmatpush2.msra.mxu0 0.0
    %479 = vmatprep.subr.mxu0 0.0
    %480 = vmatpush2.msra.mxu0 0.0
    %481 = vmatprep.subr.mxu0 0.0
    %482 = vmatpush2.msra.mxu0 0.0
    %483 = vmatprep.subr.mxu0 0.0
    %484 = vmatpush2.msra.mxu0 0.0
    %485 = vmatprep.subr.mxu0 0.0
    %486 = vmatpush2.msra.mxu0 0.0
    %487 = vmatprep.subr.mxu0 0.0
    %488 = vmatpush2.msra.mxu0 0.0
    %489 = vmatprep.subr.mxu0 0.0
    %490 = vmatpush2.msra.mxu0 0.0
    %491 = vmatprep.subr.mxu0 0.0
    %492 = vmatpush2.msra.mxu0 0.0
    %493 = vmatprep.subr.mxu0 %v162
    %494 = vmatpush2.msra.mxu0 %v161
    %495 = vmatprep.subr.mxu0 %v160
    %496 = vmatpush2.msra.mxu0 %v159
    %497 = vmatprep.subr.mxu0 %v158
    %498 = vmatpush2.msra.mxu0 %v157
    %499 = vmatprep.subr.mxu0 %v156
    %500 = vmatpush2.msra.mxu0 %v155
    %501 = vmatprep.subr.mxu0 %v154
    %502 = vmatpush2.msra.mxu0 %v153
    %503 = vmatprep.subr.mxu0 %v152
    %504 = vmatpush2.msra.mxu0 %v151
    %505 = vmatprep.subr.mxu0 %v150
    %506 = vmatpush2.msra.mxu0 %v149
    %507 = vmatprep.subr.mxu0 %v148
    %508 = vmatpush2.msra.mxu0 %v147
    %509 = vmatprep.mubr.f32.mxu0 %v434
    %510 = vmatmul.mubr.f32.gmra.mxu0 %v411
    %v511 = vpop.f32.mrf.mxu0
    %v512 = vadd.f32 0.0, %v511
    %v513 = vpop.f32.mrf.mxu0
    %v514 = vadd.f32 0.0, %v513
    %515 = vmatprep.mubr.f32.mxu0 %v437
    %516 = vmatmul.mubr.f32.gmra.mxu0 %v417
    %v517 = vpop.f32.mrf.mxu0
    %v518 = vadd.f32 0.0, %v517
    %v519 = vpop.f32.mrf.mxu0
    %v520 = vadd.f32 0.0, %v519
    %521 = vmatprep.mubr.f32.mxu0 %v440
    %522 = vmatmul.mubr.f32.gmra.mxu0 %v423
    %v523 = vpop.f32.mrf.mxu0
    %v524 = vadd.f32 0.0, %v523
    %v525 = vpop.f32.mrf.mxu0
    %v526 = vadd.f32 0.0, %v525
    %527 = vmatprep.mubr.f32.mxu0 %v443
    %528 = vmatmul.mubr.f32.gmra.mxu0 %v429
    %v529 = vpop.f32.mrf.mxu0
    %v530 = vadd.f32 0.0, %v529
    %v531 = vpop.f32.mrf.mxu0
    %v532 = vadd.f32 0.0, %v531
    %533 = vdwg.mxu0
    %v534 = vsub.f32 %v77, %v512
    %v535 = vsub.f32 %v78, %v514
    %v536 = vsub.f32 %v79, %v518
    %v537 = vsub.f32 %v80, %v520
    %v538 = vsub.f32 %v81, %v524
    %v539 = vsub.f32 %v82, %v526
    %v540 = vsub.f32 %v83, %v530
    %v541 = vsub.f32 %v84, %v532
    %542 = vst [vmem:[%s10] sm:$0xff] %v534
    %543 = vst.msk [vmem:[%s10 + $0x8] sm:$0xff] %vm247, %v535
    %544 = vst [vmem:[%s10 + $0x10] sm:$0xff] %v536
    %545 = vst.msk [vmem:[%s10 + $0x18] sm:$0xff] %vm247, %v537
    %546 = vst [vmem:[%s10 + $0x20] sm:$0xff] %v538
    %547 = vst.msk [vmem:[%s10 + $0x28] sm:$0xff] %vm247, %v539
    %548 = vst [vmem:[%s10 + $0x30] sm:$0xff] %v540
    %549 = vst.msk [vmem:[%s10 + $0x38] sm:$0xff] %vm247, %v541
    %v550 = vld [vmem:[%s5] sm:$0xff]
    %v551 = vld [vmem:[%s6] sm:$0xff]
    %v552 = vld [vmem:[%s6 + $0x8] sm:$0xff]
    %v553 = vld [vmem:[%s6 + $0x10] sm:$0xff]
    %v554 = vld [vmem:[%s6 + $0x18] sm:$0xff]
    %v555 = vld [vmem:[%s6 + $0x20] sm:$0xff]
    %v556 = vld [vmem:[%s6 + $0x28] sm:$0xff]
    %v557 = vld [vmem:[%s6 + $0x30] sm:$0xff]
    %v558 = vld [vmem:[%s6 + $0x38] sm:$0xff]
    %v559 = vld [vmem:[%s6 + $0x40] sm:$0xff]
    %v560 = vld [vmem:[%s6 + $0x48] sm:$0xff]
    %v561 = vld [vmem:[%s6 + $0x50] sm:$0xff]
    %v562 = vld [vmem:[%s6 + $0x58] sm:$0xff]
    %v563 = vld [vmem:[#allocation6] sm:$0xff]
    %v564 = vld [vmem:[#allocation6 + $0x8] sm:$0xff]
    %v565 = vld [vmem:[%s8] sm:$0xff]
    %v566 = vld [vmem:[%s8 + $0x8] sm:$0xff]
    %v567 = vld [vmem:[%s8 + $0x10] sm:$0xff]
    %v568 = vld [vmem:[%s8 + $0x18] sm:$0xff]
    %v569 = vld [vmem:[%s8 + $0x20] sm:$0xff]
    %v570 = vld [vmem:[%s8 + $0x28] sm:$0xff]
    %v571 = vld [vmem:[%s8 + $0x30] sm:$0xff]
    %v572 = vld [vmem:[%s8 + $0x38] sm:$0xff]
    %v573 = vld [vmem:[%s8 + $0x40] sm:$0xff]
    %v574 = vld [vmem:[%s8 + $0x48] sm:$0xff]
    %v575 = vld [vmem:[%s8 + $0x50] sm:$0xff]
    %v576 = vld [vmem:[%s8 + $0x58] sm:$0xff]
    %vm577 = vcmask 130048
    %v579 = vsel %vm577, %v550, 0
    %581 = vmatprep.subr.mxu0 0.0
    %582 = vmatpush1.msra.mxu0 0.0
    %583 = vmatprep.subr.mxu0 0.0
    %584 = vmatpush1.msra.mxu0 0.0
    %585 = vmatprep.subr.mxu0 0.0
    %586 = vmatpush1.msra.mxu0 0.0
    %587 = vmatprep.subr.mxu0 0.0
    %588 = vmatpush1.msra.mxu0 0.0
    %589 = vmatprep.subr.mxu0 0.0
    %590 = vmatpush1.msra.mxu0 0.0
    %591 = vmatprep.subr.mxu0 0.0
    %592 = vmatpush1.msra.mxu0 0.0
    %593 = vmatprep.subr.mxu0 0.0
    %594 = vmatpush1.msra.mxu0 0.0
    %595 = vmatprep.subr.mxu0 0.0
    %596 = vmatpush1.msra.mxu0 0.0
    %597 = vmatprep.subr.mxu0 0.0
    %598 = vmatpush1.msra.mxu0 0.0
    %599 = vmatprep.subr.mxu0 0.0
    %600 = vmatpush1.msra.mxu0 0.0
    %601 = vmatprep.subr.mxu0 0.0
    %602 = vmatpush1.msra.mxu0 0.0
    %603 = vmatprep.subr.mxu0 0.0
    %604 = vmatpush1.msra.mxu0 0.0
    %605 = vmatprep.subr.mxu0 0.0
    %606 = vmatpush1.msra.mxu0 0.0
    %607 = vmatprep.subr.mxu0 0.0
    %608 = vmatpush1.msra.mxu0 0.0
    %609 = vmatprep.subr.mxu0 0.0
    %610 = vmatpush1.msra.mxu0 %v326
    %611 = vmatprep.subr.mxu0 0.0
    %612 = vmatpush1.msra.mxu0 %v321
    %613 = vmatprep.subr.mxu0 0.0
    %614 = vmatpush2.msra.mxu0 0.0
    %615 = vmatprep.subr.mxu0 0.0
    %616 = vmatpush2.msra.mxu0 0.0
    %617 = vmatprep.subr.mxu0 0.0
    %618 = vmatpush2.msra.mxu0 0.0
    %619 = vmatprep.subr.mxu0 0.0
    %620 = vmatpush2.msra.mxu0 0.0
    %621 = vmatprep.subr.mxu0 0.0
    %622 = vmatpush2.msra.mxu0 0.0
    %623 = vmatprep.subr.mxu0 0.0
    %624 = vmatpush2.msra.mxu0 0.0
    %625 = vmatprep.subr.mxu0 0.0
    %626 = vmatpush2.msra.mxu0 0.0
    %627 = vmatprep.subr.mxu0 0.0
    %628 = vmatpush2.msra.mxu0 0.0
    %629 = vmatprep.subr.mxu0 0.0
    %630 = vmatpush2.msra.mxu0 0.0
    %631 = vmatprep.subr.mxu0 0.0
    %632 = vmatpush2.msra.mxu0 0.0
    %633 = vmatprep.subr.mxu0 0.0
    %634 = vmatpush2.msra.mxu0 0.0
    %635 = vmatprep.subr.mxu0 0.0
    %636 = vmatpush2.msra.mxu0 0.0
    %637 = vmatprep.subr.mxu0 0.0
    %638 = vmatpush2.msra.mxu0 0.0
    %639 = vmatprep.subr.mxu0 0.0
    %640 = vmatpush2.msra.mxu0 0.0
    %641 = vmatprep.subr.mxu0 0.0
    %642 = vmatpush2.msra.mxu0 0.0
    %643 = vmatprep.subr.mxu0 0.0
    %644 = vmatpush2.msra.mxu0 0.0
    %645 = vmatprep.mubr.f32.mxu0 0.0
    %646 = vmatmul.mubr.f32.gmra.mxu0 %v579
    %v647 = vpop.f32.mrf.mxu0
    %v648 = vadd.f32 0.0, %v647
    %v649 = vpop.f32.mrf.mxu0
    %650 = vdwg.mxu0
    %v652 = vsel %vm329, %v648, 0
    %654 = vmatprep.subr.mxu0 0.0
    %655 = vmatpush1.msra.mxu0 0.0
    %656 = vmatprep.subr.mxu0 0.0
    %657 = vmatpush1.msra.mxu0 0.0
    %658 = vmatprep.subr.mxu0 0.0
    %659 = vmatpush1.msra.mxu0 0.0
    %660 = vmatprep.subr.mxu0 0.0
    %661 = vmatpush1.msra.mxu0 0.0
    %662 = vmatprep.subr.mxu0 0.0
    %663 = vmatpush1.msra.mxu0 %v562
    %664 = vmatprep.subr.mxu0 0.0
    %665 = vmatpush1.msra.mxu0 %v561
    %666 = vmatprep.subr.mxu0 0.0
    %667 = vmatpush1.msra.mxu0 %v560
    %668 = vmatprep.subr.mxu0 0.0
    %669 = vmatpush1.msra.mxu0 %v559
    %670 = vmatprep.subr.mxu0 0.0
    %671 = vmatpush1.msra.mxu0 %v558
    %672 = vmatprep.subr.mxu0 0.0
    %673 = vmatpush1.msra.mxu0 %v557
    %674 = vmatprep.subr.mxu0 0.0
    %675 = vmatpush1.msra.mxu0 %v556
    %676 = vmatprep.subr.mxu0 0.0
    %677 = vmatpush1.msra.mxu0 %v555
    %678 = vmatprep.subr.mxu0 0.0
    %679 = vmatpush1.msra.mxu0 %v554
    %680 = vmatprep.subr.mxu0 0.0
    %681 = vmatpush1.msra.mxu0 %v553
    %682 = vmatprep.subr.mxu0 0.0
    %683 = vmatpush1.msra.mxu0 %v552
    %684 = vmatprep.subr.mxu0 0.0
    %685 = vmatpush1.msra.mxu0 %v551
    %686 = vmatprep.subr.mxu0 0.0
    %687 = vmatpush2.msra.mxu0 0.0
    %688 = vmatprep.subr.mxu0 0.0
    %689 = vmatpush2.msra.mxu0 0.0
    %690 = vmatprep.subr.mxu0 0.0
    %691 = vmatpush2.msra.mxu0 0.0
    %692 = vmatprep.subr.mxu0 0.0
    %693 = vmatpush2.msra.mxu0 0.0
    %694 = vmatprep.subr.mxu0 0.0
    %695 = vmatpush2.msra.mxu0 0.0
    %696 = vmatprep.subr.mxu0 0.0
    %697 = vmatpush2.msra.mxu0 0.0
    %698 = vmatprep.subr.mxu0 0.0
    %699 = vmatpush2.msra.mxu0 0.0
    %700 = vmatprep.subr.mxu0 0.0
    %701 = vmatpush2.msra.mxu0 0.0
    %702 = vmatprep.subr.mxu0 0.0
    %703 = vmatpush2.msra.mxu0 0.0
    %704 = vmatprep.subr.mxu0 0.0
    %705 = vmatpush2.msra.mxu0 0.0
    %706 = vmatprep.subr.mxu0 0.0
    %707 = vmatpush2.msra.mxu0 0.0
    %708 = vmatprep.subr.mxu0 0.0
    %709 = vmatpush2.msra.mxu0 0.0
    %710 = vmatprep.subr.mxu0 0.0
    %711 = vmatpush2.msra.mxu0 0.0
    %712 = vmatprep.subr.mxu0 0.0
    %713 = vmatpush2.msra.mxu0 0.0
    %714 = vmatprep.subr.mxu0 0.0
    %715 = vmatpush2.msra.mxu0 0.0
    %716 = vmatprep.subr.mxu0 0.0
    %717 = vmatpush2.msra.mxu0 0.0
    %718 = vmatprep.mubr.f32.mxu0 0.0
    %719 = vmatmul.mubr.f32.gmra.mxu0 %v652
    %v720 = vpop.f32.mrf.mxu0
    %v721 = vadd.f32 0.0, %v720
    %v722 = vpop.f32.mrf.mxu0
    %723 = vdwg.mxu0
    %vm724 = vcmask 392192
    %725 = vst.msk [vmem:[%s11] sm:$0xff] %vm724, %v721
    %v727 = vsel %vm577, %v563, 0
    %v730 = vsel %vm577, %v564, 0
    %732 = vmatprep.subr.mxu0 0.0
    %733 = vmatpush1.msra.mxu0 0.0
    %734 = vmatprep.subr.mxu0 0.0
    %735 = vmatpush1.msra.mxu0 0.0
    %736 = vmatprep.subr.mxu0 0.0
    %737 = vmatpush1.msra.mxu0 0.0
    %738 = vmatprep.subr.mxu0 0.0
    %739 = vmatpush1.msra.mxu0 0.0
    %740 = vmatprep.subr.mxu0 0.0
    %741 = vmatpush1.msra.mxu0 0.0
    %742 = vmatprep.subr.mxu0 0.0
    %743 = vmatpush1.msra.mxu0 0.0
    %744 = vmatprep.subr.mxu0 0.0
    %745 = vmatpush1.msra.mxu0 0.0
    %746 = vmatprep.subr.mxu0 0.0
    %747 = vmatpush1.msra.mxu0 0.0
    %748 = vmatprep.subr.mxu0 0.0
    %749 = vmatpush1.msra.mxu0 0.0
    %750 = vmatprep.subr.mxu0 0.0
    %751 = vmatpush1.msra.mxu0 0.0
    %752 = vmatprep.subr.mxu0 0.0
    %753 = vmatpush1.msra.mxu0 0.0
    %754 = vmatprep.subr.mxu0 0.0
    %755 = vmatpush1.msra.mxu0 0.0
    %756 = vmatprep.subr.mxu0 0.0
    %757 = vmatpush1.msra.mxu0 0.0
    %758 = vmatprep.subr.mxu0 0.0
    %759 = vmatpush1.msra.mxu0 0.0
    %760 = vmatprep.subr.mxu0 0.0
    %761 = vmatpush1.msra.mxu0 %v326
    %762 = vmatprep.subr.mxu0 0.0
    %763 = vmatpush1.msra.mxu0 %v321
    %764 = vmatprep.subr.mxu0 0.0
    %765 = vmatpush2.msra.mxu0 0.0
    %766 = vmatprep.subr.mxu0 0.0
    %767 = vmatpush2.msra.mxu0 0.0
    %768 = vmatprep.subr.mxu0 0.0
    %769 = vmatpush2.msra.mxu0 0.0
    %770 = vmatprep.subr.mxu0 0.0
    %771 = vmatpush2.msra.mxu0 0.0
    %772 = vmatprep.subr.mxu0 0.0
    %773 = vmatpush2.msra.mxu0 0.0
    %774 = vmatprep.subr.mxu0 0.0
    %775 = vmatpush2.msra.mxu0 0.0
    %776 = vmatprep.subr.mxu0 0.0
    %777 = vmatpush2.msra.mxu0 0.0
    %778 = vmatprep.subr.mxu0 0.0
    %779 = vmatpush2.msra.mxu0 0.0
    %780 = vmatprep.subr.mxu0 0.0
    %781 = vmatpush2.msra.mxu0 0.0
    %782 = vmatprep.subr.mxu0 0.0
    %783 = vmatpush2.msra.mxu0 0.0
    %784 = vmatprep.subr.mxu0 0.0
    %785 = vmatpush2.msra.mxu0 0.0
    %786 = vmatprep.subr.mxu0 0.0
    %787 = vmatpush2.msra.mxu0 0.0
    %788 = vmatprep.subr.mxu0 0.0
    %789 = vmatpush2.msra.mxu0 0.0
    %790 = vmatprep.subr.mxu0 0.0
    %791 = vmatpush2.msra.mxu0 0.0
    %792 = vmatprep.subr.mxu0 0.0
    %793 = vmatpush2.msra.mxu0 0.0
    %794 = vmatprep.subr.mxu0 0.0
    %795 = vmatpush2.msra.mxu0 0.0
    %796 = vmatprep.mubr.f32.mxu0 0.0
    %797 = vmatmul.mubr.f32.gmra.mxu0 %v727
    %v798 = vpop.f32.mrf.mxu0
    %v799 = vadd.f32 0.0, %v798
    %v800 = vpop.f32.mrf.mxu0
    %801 = vmatprep.mubr.f32.mxu0 0.0
    %802 = vmatmul.mubr.f32.gmra.mxu0 %v730
    %v803 = vpop.f32.mrf.mxu0
    %v804 = vadd.f32 0.0, %v803
    %v805 = vpop.f32.mrf.mxu0
    %806 = vdwg.mxu0
    %v808 = vsel %vm329, %v799, 0
    %v811 = vsel %vm329, %v804, 0
    %813 = vmatprep.subr.mxu0 0.0
    %814 = vmatpush1.msra.mxu0 0.0
    %815 = vmatprep.subr.mxu0 0.0
    %816 = vmatpush1.msra.mxu0 0.0
    %817 = vmatprep.subr.mxu0 0.0
    %818 = vmatpush1.msra.mxu0 0.0
    %819 = vmatprep.subr.mxu0 0.0
    %820 = vmatpush1.msra.mxu0 0.0
    %821 = vmatprep.subr.mxu0 0.0
    %822 = vmatpush1.msra.mxu0 %v576
    %823 = vmatprep.subr.mxu0 0.0
    %824 = vmatpush1.msra.mxu0 %v575
    %825 = vmatprep.subr.mxu0 0.0
    %826 = vmatpush1.msra.mxu0 %v574
    %827 = vmatprep.subr.mxu0 0.0
    %828 = vmatpush1.msra.mxu0 %v573
    %829 = vmatprep.subr.mxu0 0.0
    %830 = vmatpush1.msra.mxu0 %v572
    %831 = vmatprep.subr.mxu0 0.0
    %832 = vmatpush1.msra.mxu0 %v571
    %833 = vmatprep.subr.mxu0 0.0
    %834 = vmatpush1.msra.mxu0 %v570
    %835 = vmatprep.subr.mxu0 0.0
    %836 = vmatpush1.msra.mxu0 %v569
    %837 = vmatprep.subr.mxu0 0.0
    %838 = vmatpush1.msra.mxu0 %v568
    %839 = vmatprep.subr.mxu0 0.0
    %840 = vmatpush1.msra.mxu0 %v567
    %841 = vmatprep.subr.mxu0 0.0
    %842 = vmatpush1.msra.mxu0 %v566
    %843 = vmatprep.subr.mxu0 0.0
    %844 = vmatpush1.msra.mxu0 %v565
    %845 = vmatprep.subr.mxu0 0.0
    %846 = vmatpush2.msra.mxu0 0.0
    %847 = vmatprep.subr.mxu0 0.0
    %848 = vmatpush2.msra.mxu0 0.0
    %849 = vmatprep.subr.mxu0 0.0
    %850 = vmatpush2.msra.mxu0 0.0
    %851 = vmatprep.subr.mxu0 0.0
    %852 = vmatpush2.msra.mxu0 0.0
    %853 = vmatprep.subr.mxu0 0.0
    %854 = vmatpush2.msra.mxu0 0.0
    %855 = vmatprep.subr.mxu0 0.0
    %856 = vmatpush2.msra.mxu0 0.0
    %857 = vmatprep.subr.mxu0 0.0
    %858 = vmatpush2.msra.mxu0 0.0
    %859 = vmatprep.subr.mxu0 0.0
    %860 = vmatpush2.msra.mxu0 0.0
    %861 = vmatprep.subr.mxu0 0.0
    %862 = vmatpush2.msra.mxu0 0.0
    %863 = vmatprep.subr.mxu0 0.0
    %864 = vmatpush2.msra.mxu0 0.0
    %865 = vmatprep.subr.mxu0 0.0
    %866 = vmatpush2.msra.mxu0 0.0
    %867 = vmatprep.subr.mxu0 0.0
    %868 = vmatpush2.msra.mxu0 0.0
    %869 = vmatprep.subr.mxu0 0.0
    %870 = vmatpush2.msra.mxu0 0.0
    %871 = vmatprep.subr.mxu0 0.0
    %872 = vmatpush2.msra.mxu0 0.0
    %873 = vmatprep.subr.mxu0 0.0
    %874 = vmatpush2.msra.mxu0 0.0
    %875 = vmatprep.subr.mxu0 0.0
    %876 = vmatpush2.msra.mxu0 0.0
    %877 = vmatprep.mubr.f32.mxu0 0.0
    %878 = vmatmul.mubr.f32.gmra.mxu0 %v808
    %v879 = vpop.f32.mrf.mxu0
    %v880 = vadd.f32 0.0, %v879
    %v881 = vpop.f32.mrf.mxu0
    %882 = vmatprep.mubr.f32.mxu0 0.0
    %883 = vmatmul.mubr.f32.gmra.mxu0 %v811
    %v884 = vpop.f32.mrf.mxu0
    %v885 = vadd.f32 0.0, %v884
    %v886 = vpop.f32.mrf.mxu0
    %887 = vdwg.mxu0
    %v888 = vsub.f32 %v321, %v880
    %v889 = vsub.f32 %v326, %v885
    %890 = vst.msk [vmem:[%s12] sm:$0xff] %vm329, %v888
    %891 = vst.msk [vmem:[%s12 + $0x8] sm:$0xff] %vm329, %v889
    // Predicated region
    $region50: #{laplacian_pyramid.1} parent=1 // pred_check
      _
    $region51: #{laplacian_pyramid.1} parent=1 // pred_check_branch
      %893 = sbr.rel (0) target = $region53
    $region52: #{laplacian_pyramid.1} parent=1 // pred_region
      _
    $region53: #{laplacian_pyramid.1} parent=1 // pred_fallthru
      _
    // Predicated region
    $region54: #{laplacian_pyramid.1} parent=1 // pred_check
      _
    $region55: #{laplacian_pyramid.1} parent=1 // pred_check_branch
      %895 = sbr.rel (0) target = $region57
    $region56: #{laplacian_pyramid.1} parent=1 // pred_region
      _
    $region57: #{laplacian_pyramid.1} parent=1 // pred_fallthru
      _
    // Predicated region
    $region58: #{laplacian_pyramid.1} parent=1 // pred_check
      _
    $region59: #{laplacian_pyramid.1} parent=1 // pred_check_branch
      %897 = sbr.rel (0) target = $region61
    $region60: #{laplacian_pyramid.1} parent=1 // pred_region
      _
    $region61: #{laplacian_pyramid.1} parent=1 // pred_fallthru
      _
    // Predicated region
    $region62: #{laplacian_pyramid.1} parent=1 // pred_check
      _
    $region63: #{laplacian_pyramid.1} parent=1 // pred_check_branch
      %899 = sbr.rel (0) target = $region65
    $region64: #{laplacian_pyramid.1} parent=1 // pred_region
      _
    $region65: #{laplacian_pyramid.1} parent=1 // pred_fallthru
      _
    // Predicated region
    $region66: #{laplacian_pyramid.1} parent=1 // pred_check
      _
    $region67: #{laplacian_pyramid.1} parent=1 // pred_check_branch
      %901 = sbr.rel (0) target = $region69
    $region68: #{laplacian_pyramid.1} parent=1 // pred_region
      _
    $region69: #{laplacian_pyramid.1} parent=1 // pred_fallthru
      _
    // Predicated region
    $region70: #{laplacian_pyramid.1} parent=1 // pred_check
      _
    $region71: #{laplacian_pyramid.1} parent=1 // pred_check_branch
      %903 = sbr.rel (0) target = $region73
    $region72: #{laplacian_pyramid.1} parent=1 // pred_region
      _
    $region73: #{laplacian_pyramid.1} parent=1 // pred_fallthru
      _
    // Predicated region
    $region74: #{laplacian_pyramid.1} parent=1 // pred_check
      _
    $region75: #{laplacian_pyramid.1} parent=1 // pred_check_branch
      %905 = sbr.rel (0) target = $region77
    $region76: #{laplacian_pyramid.1} parent=1 // pred_region
      _
    $region77: #{laplacian_pyramid.1} parent=1 // pred_fallthru
      _
    // Predicated region
    $region78: #{laplacian_pyramid.1} parent=1 // pred_check
      _
    $region79: #{laplacian_pyramid.1} parent=1 // pred_check_branch
      %907 = sbr.rel (0) target = $region81
    $region80: #{laplacian_pyramid.1} parent=1 // pred_region
      _
    $region81: #{laplacian_pyramid.1} parent=1 // pred_fallthru
      _
    %908 = vsyncpa [#allocation3], 1
    %909 = vsyncpa [#allocation5], 1

</llo_original>
